<compile_context>
chip_gen: v7x
topology: tpu7x:2x2x1
jax: 0.10.0
libtpu: 0.0.40
codegen_flags: <defaults>
</compile_context>

<pallas_src>
import jax
import jax.numpy as jnp
from jax.experimental import pallas as pl
from jax.experimental.pallas import tpu as pltpu


def _policy_kernel(x_ref, theta_ref, emb_ref, probs_ref, logits_ref):
    # x_ref:      (B, K)   VMEM
    # theta_ref:  (K, K)   VMEM
    # emb_ref:    (K, N)   VMEM
    # probs_ref:  (B, N)   VMEM output
    # logits_ref: (B, N)   VMEM output
    x = x_ref[...]
    theta = theta_ref[...]
    emb = emb_ref[...]

    # First matmul: user transformation (MXU)
    x_t = jnp.dot(x, theta, preferred_element_type=jnp.float32)
    # Second matmul: scores against fixed item embeddings (MXU)
    logits = jnp.dot(x_t, emb, preferred_element_type=jnp.float32)

    logits_ref[...] = logits.astype(logits_ref.dtype)

    # Numerically-stable softmax along the last (lane) axis.
    # Max/sum reductions hit the XLU, exp hits the EUP, and the approximate
    # reciprocal also goes to the EUP slot — all off the VPU critical path.
    m = jnp.max(logits, axis=-1, keepdims=True)
    e = jnp.exp(logits - m)
    denom = jnp.sum(e, axis=-1, keepdims=True)
    probs_ref[...] = (e * pl.reciprocal(denom, approx=True)).astype(probs_ref.dtype)


def policy_forward(x, theta, emb):
    """x: (B, K), theta: (K, K), emb: (K, N). Returns (probs, log_unnormalized)."""
    B, K = x.shape
    K2, N = emb.shape
    assert K == K2 and theta.shape == (K, K)

    vmem_spec = pl.BlockSpec(memory_space=pltpu.MemorySpace.VMEM)

    probs, logits = pl.pallas_call(
        _policy_kernel,
        out_shape=(
            jax.ShapeDtypeStruct((B, N), jnp.float32),
            jax.ShapeDtypeStruct((B, N), jnp.float32),
        ),
        # No grid: single invocation, whole operands as full VMEM blocks.
        in_specs=[vmem_spec, vmem_spec, vmem_spec],
        out_specs=(vmem_spec, vmem_spec),
    )(x, theta, emb)
    return probs, logits


if __name__ == "__main__":
    # Small shapes consistent with the module:
    #   emb_input (numpy) would be (N_items, K) -> module stores emb.T = (K, N_items)
    B, K, N = 8, 32, 128

    key = jax.random.PRNGKey(0)
    k_emb, k_theta, k_x = jax.random.split(key, 3)

    # Fixed item embeddings (already transposed, as the module stores them): (K, N)
    emb = jax.random.normal(k_emb, (K, N), dtype=jnp.float32)
    # theta ~ 0.005 * randn(K, K), matching torch.nn.Parameter init
    theta = 0.005 * jax.random.normal(k_theta, (K, K), dtype=jnp.float32)
    # log_sigma parameter exists in the module but is unused in forward().
    log_sigma = jnp.zeros((1,), dtype=jnp.float32)  # kept for parity; not used

    # User features
    x = jax.random.normal(k_x, (B, K), dtype=jnp.float32)

    fwd = jax.jit(policy_forward)
    probs, logits = fwd(x, theta, emb)
    jax.block_until_ready((probs, logits))

    # Reference check in plain JAX (tolerances account for approx reciprocal)
    logits_ref = (x @ theta) @ emb
    probs_ref = jax.nn.softmax(logits_ref, axis=-1)
    assert jnp.allclose(logits, logits_ref, atol=1e-4, rtol=1e-4)
    assert jnp.allclose(probs, probs_ref, atol=1e-4, rtol=1e-3)

    print("KERNEL_OK")
</pallas_src>

<mosaic_0001>
module attributes {stable_mosaic.version = 11 : i64} {
  func.func @_policy_kernel(%arg0: memref<8x32xf32, #tpu.memory_space<vmem>>, %arg1: memref<32x32xf32, #tpu.memory_space<vmem>>, %arg2: memref<32x128xf32, #tpu.memory_space<vmem>>, %arg3: memref<8x128xf32, #tpu.memory_space<vmem>>, %arg4: memref<8x128xf32, #tpu.memory_space<vmem>>) attributes {dimension_semantics = [], scalar_prefetch = 0 : i64, scratch_operands = 0 : i64, tpu.core_type = #tpu.core_type<tc>} {
    %c0 = arith.constant 0 : index
    %c0_0 = arith.constant 0 : index
    %0 = vector.load %arg0[%c0, %c0_0] : memref<8x32xf32, #tpu.memory_space<vmem>>, vector<8x32xf32>
    %c0_1 = arith.constant 0 : index
    %c0_2 = arith.constant 0 : index
    %1 = vector.load %arg1[%c0_1, %c0_2] : memref<32x32xf32, #tpu.memory_space<vmem>>, vector<32x32xf32>
    %c0_3 = arith.constant 0 : index
    %c0_4 = arith.constant 0 : index
    %2 = vector.load %arg2[%c0_3, %c0_4] : memref<32x128xf32, #tpu.memory_space<vmem>>, vector<32x128xf32>
    %cst = arith.constant dense<0.000000e+00> : vector<8x32xf32>
    %3 = tpu.matmul %0, %1, %cst {dimension_numbers = #tpu.dot_dimension_numbers<[1], [0], [0], [1], [0, 0, 1, 1], [], []>} : vector<8x32xf32>, vector<32x32xf32>, vector<8x32xf32> -> vector<8x32xf32>
    %cst_5 = arith.constant dense<0.000000e+00> : vector<8x128xf32>
    %4 = tpu.matmul %3, %2, %cst_5 {dimension_numbers = #tpu.dot_dimension_numbers<[1], [0], [0], [1], [0, 0, 1, 1], [], []>} : vector<8x32xf32>, vector<32x128xf32>, vector<8x128xf32> -> vector<8x128xf32>
    %c0_6 = arith.constant 0 : index
    %c0_7 = arith.constant 0 : index
    %5 = vector.load %arg4[%c0_6, %c0_7] : memref<8x128xf32, #tpu.memory_space<vmem>>, vector<8x128xf32>
    tpu.vector_store %arg4[%c0_6, %c0_7], %4 {strides = array<i32>} : memref<8x128xf32, #tpu.memory_space<vmem>>, vector<8x128xf32>,
    %cst_8 = arith.constant dense<0xFF800000> : vector<8xf32>
    %6 = vector.multi_reduction <maximumf>, %4, %cst_8 [1] : vector<8x128xf32> to vector<8xf32>
    %7 = vector.shape_cast %6 : vector<8xf32> to vector<8x1xf32>
    %8 = vector.broadcast %7 : vector<8x1xf32> to vector<8x128xf32>
    %9 = arith.subf %4, %8 : vector<8x128xf32>
    %10 = math.exp %9 : vector<8x128xf32>
    %cst_9 = arith.constant dense<0.000000e+00> : vector<8xf32>
    %11 = vector.multi_reduction <add>, %10, %cst_9 [1] : vector<8x128xf32> to vector<8xf32>
    %12 = vector.shape_cast %11 : vector<8xf32> to vector<8x1xf32>
    %13 = tpu.reciprocal %12 {approx = true} : vector<8x1xf32> -> vector<8x1xf32>
    %14 = vector.broadcast %13 : vector<8x1xf32> to vector<8x128xf32>
    %15 = arith.mulf %10, %14 : vector<8x128xf32>
    %c0_10 = arith.constant 0 : index
    %c0_11 = arith.constant 0 : index
    %16 = vector.load %arg3[%c0_10, %c0_11] : memref<8x128xf32, #tpu.memory_space<vmem>>, vector<8x128xf32>
    tpu.vector_store %arg3[%c0_10, %c0_11], %15 {strides = array<i32>} : memref<8x128xf32, #tpu.memory_space<vmem>>, vector<8x128xf32>,
    return
  }
}

</mosaic_0001>

<llo_original>
// kernel: policy_forward.1
$region0: #{policy_forward.1}
  #allocation0 [shape = 'u32[]', space=smem, size = 0x4, offset = 0x4, fixed_abs, tag = 'smem constant byte address 0x4 - core index']
  #allocation1 [shape = 'u32[144,128]{1,0:T(1,128)}', space=vmem, size = 0x12000, scoped, tag = 'internal scratch']
  %s0 = inlined_call_operand.hbm [shape: f32[8,32], index: 0, kind: input, shape index: {}]
  %s1 = inlined_call_operand.hbm [shape: f32[32,32], index: 1, kind: input, shape index: {}]
  %s2 = inlined_call_operand.hbm [shape: f32[32,128], index: 2, kind: input, shape index: {}]
  %s3 = inlined_call_operand.hbm [shape: f32[8,128], index: 3, kind: output, shape index: {0}]
  %s4 = inlined_call_operand.hbm [shape: f32[8,128], index: 4, kind: output, shape index: {1}]
  %5 = xla_tuple %s3, %s4
  %s6 = sld [smem:[#allocation0]]
  $region42: #{policy_forward.1} parent=0
    _
  %s8 = ssub.s32 1, %s6
  %s9 = scalar_select 0, %s8, %s6
  $region1: #{policy_forward.1} parent=0
    #allocation2 [shape = 'u8[4096]{0}', space=vmem, size = 0x1000, scoped, tag = 'input window, operand 0, single buffered']
    #allocation3 [shape = 's32[1]{0}', space=sflag, size = 0x4, scoped, tag = 'scoped memory for policy_forward.1']
    #allocation4 [shape = 's32[1]{0}', space=sflag, size = 0x4, scoped, tag = 'scoped memory for policy_forward.1']
    #allocation5 [shape = 'u8[16384]{0}', space=vmem, size = 0x4000, scoped, tag = 'input window, operand 1, single buffered']
    #allocation6 [shape = 's32[1]{0}', space=sflag, size = 0x4, scoped, tag = 'scoped memory for policy_forward.1']
    #allocation7 [shape = 'u8[16384]{0}', space=vmem, size = 0x4000, scoped, tag = 'input window, operand 2, single buffered']
    #allocation8 [shape = 'u8[4096]{0}', space=vmem, size = 0x1000, scoped, tag = 'output window, operand 0, single buffered']
    #allocation9 [shape = 'u8[4096]{0}', space=vmem, size = 0x1000, scoped, tag = 'output window, operand 1, single buffered']
    #allocation10 [shape = 's32[1]{0}', space=sflag, size = 0x4, scoped, tag = 'scoped memory for policy_forward.1']
    %10 = vsyncpa [#allocation3], 0
    %11 = vsyncpa [#allocation6], 0
    %12 = vsyncpa [#allocation4], 0
    %13 = vsyncpa [#allocation10], 0
    // Predicated region
    $region2: #{policy_forward.1} parent=1 // pred_check
      _
    $region3: #{policy_forward.1} parent=1 // pred_check_branch
      %15 = sbr.rel (0) target = $region5
    $region4: #{policy_forward.1} parent=1 // pred_region
      %s17 = ssub.s32 128, 128
      %18 = vsyncadd [#allocation3], %s17
      %s20 = sshll.u32 [#allocation2], 4
      %s21 = int_to_ptr.vmem [resolvable:$true] %s20
      %23 = dma.hbm_to_vmem [thread:$0]  %s0, 128, %s21, [#allocation3]
    $region5: #{policy_forward.1} parent=1 // pred_fallthru
      _
    // Predicated region
    $region6: #{policy_forward.1} parent=1 // pred_check
      _
    $region7: #{policy_forward.1} parent=1 // pred_check_branch
      %25 = sbr.rel (0) target = $region9
    $region8: #{policy_forward.1} parent=1 // pred_region
      %s27 = ssub.s32 512, 512
      %28 = vsyncadd [#allocation6], %s27
      %s29 = sshll.u32 [#allocation5], 4
      %s30 = int_to_ptr.vmem [resolvable:$true] %s29
      %35 = dma.hbm_to_vmem [thread:$0]  %s1, 512, %s30, [#allocation6], 128, 128, 8
    $region9: #{policy_forward.1} parent=1 // pred_fallthru
      _
    // Predicated region
    $region10: #{policy_forward.1} parent=1 // pred_check
      _
    $region11: #{policy_forward.1} parent=1 // pred_check_branch
      %37 = sbr.rel (0) target = $region13
    $region12: #{policy_forward.1} parent=1 // pred_region
      %s39 = ssub.s32 512, 512
      %40 = vsyncadd [#allocation6], %s39
      %s41 = sshll.u32 [#allocation7], 4
      %s42 = int_to_ptr.vmem [resolvable:$true] %s41
      %47 = dma.hbm_to_vmem [thread:$0]  %s2, 512, %s42, [#allocation6], 128, 128, 8
    $region13: #{policy_forward.1} parent=1 // pred_fallthru
      _
    // Predicated region
    $region14: #{policy_forward.1} parent=1 // pred_check
      _
    $region15: #{policy_forward.1} parent=1 // pred_check_branch
      %49 = sbr.rel (0) target = $region17
    $region16: #{policy_forward.1} parent=1 // pred_region
      %50 = dma.done [#allocation3], 128
    $region17: #{policy_forward.1} parent=1 // pred_fallthru
      _
    // Predicated region
    $region18: #{policy_forward.1} parent=1 // pred_check
      _
    $region19: #{policy_forward.1} parent=1 // pred_check_branch
      %52 = sbr.rel (0) target = $region21
    $region20: #{policy_forward.1} parent=1 // pred_region
      %53 = dma.done [#allocation6], 512
    $region21: #{policy_forward.1} parent=1 // pred_fallthru
      _
    // Predicated region
    $region22: #{policy_forward.1} parent=1 // pred_check
      _
    $region23: #{policy_forward.1} parent=1 // pred_check_branch
      %55 = sbr.rel (0) target = $region25
    $region24: #{policy_forward.1} parent=1 // pred_region
      %56 = dma.done [#allocation6], 512
    $region25: #{policy_forward.1} parent=1 // pred_fallthru
      _
    %v57 = vld [vmem:[#allocation2] sm:$0xff]
    %v58 = vld [vmem:[#allocation5] sm:$0xff]
    %v59 = vld [vmem:[#allocation5 + $0x8] sm:$0xff]
    %v60 = vld [vmem:[#allocation5 + $0x10] sm:$0xff]
    %v61 = vld [vmem:[#allocation5 + $0x18] sm:$0xff]
    %v62 = vld [vmem:[#allocation7] sm:$0xff]
    %v63 = vld [vmem:[#allocation7 + $0x8] sm:$0xff]
    %v64 = vld [vmem:[#allocation7 + $0x10] sm:$0xff]
    %v65 = vld [vmem:[#allocation7 + $0x18] sm:$0xff]
    %vm66 = vcmask 261120
    %v68 = vsel %vm66, %v57, 0
    %70 = vmatprep.subr.mxu0 0.0
    %71 = vmatpush1.msra.mxu0 %v58
    %72 = vmatprep.subr.mxu0 0.0
    %73 = vmatpush1.msra.mxu0 %v59
    %74 = vmatprep.subr.mxu0 0.0
    %75 = vmatpush1.msra.mxu0 %v60
    %76 = vmatprep.subr.mxu0 0.0
    %77 = vmatpush1.msra.mxu0 %v61
    %78 = vmatprep.subr.mxu0 0.0
    %79 = vmatpush1.msra.mxu0 0.0
    %80 = vmatprep.subr.mxu0 0.0
    %81 = vmatpush1.msra.mxu0 0.0
    %82 = vmatprep.subr.mxu0 0.0
    %83 = vmatpush1.msra.mxu0 0.0
    %84 = vmatprep.subr.mxu0 0.0
    %85 = vmatpush1.msra.mxu0 0.0
    %86 = vmatprep.subr.mxu0 0.0
    %87 = vmatpush1.msra.mxu0 0.0
    %88 = vmatprep.subr.mxu0 0.0
    %89 = vmatpush1.msra.mxu0 0.0
    %90 = vmatprep.subr.mxu0 0.0
    %91 = vmatpush1.msra.mxu0 0.0
    %92 = vmatprep.subr.mxu0 0.0
    %93 = vmatpush1.msra.mxu0 0.0
    %94 = vmatprep.subr.mxu0 0.0
    %95 = vmatpush1.msra.mxu0 0.0
    %96 = vmatprep.subr.mxu0 0.0
    %97 = vmatpush1.msra.mxu0 0.0
    %98 = vmatprep.subr.mxu0 0.0
    %99 = vmatpush1.msra.mxu0 0.0
    %100 = vmatprep.subr.mxu0 0.0
    %101 = vmatpush1.msra.mxu0 0.0
    %102 = vmatprep.subr.mxu0 0.0
    %103 = vmatpush1.msra.mxu0 0.0
    %104 = vmatprep.subr.mxu0 0.0
    %105 = vmatpush1.msra.mxu0 0.0
    %106 = vmatprep.subr.mxu0 0.0
    %107 = vmatpush1.msra.mxu0 0.0
    %108 = vmatprep.subr.mxu0 0.0
    %109 = vmatpush1.msra.mxu0 0.0
    %110 = vmatprep.subr.mxu0 0.0
    %111 = vmatpush1.msra.mxu0 0.0
    %112 = vmatprep.subr.mxu0 0.0
    %113 = vmatpush1.msra.mxu0 0.0
    %114 = vmatprep.subr.mxu0 0.0
    %115 = vmatpush1.msra.mxu0 0.0
    %116 = vmatprep.subr.mxu0 0.0
    %117 = vmatpush1.msra.mxu0 0.0
    %118 = vmatprep.subr.mxu0 0.0
    %119 = vmatpush1.msra.mxu0 0.0
    %120 = vmatprep.subr.mxu0 0.0
    %121 = vmatpush1.msra.mxu0 0.0
    %122 = vmatprep.subr.mxu0 0.0
    %123 = vmatpush1.msra.mxu0 0.0
    %124 = vmatprep.subr.mxu0 0.0
    %125 = vmatpush1.msra.mxu0 0.0
    %126 = vmatprep.subr.mxu0 0.0
    %127 = vmatpush1.msra.mxu0 0.0
    %128 = vmatprep.subr.mxu0 0.0
    %129 = vmatpush1.msra.mxu0 0.0
    %130 = vmatprep.subr.mxu0 0.0
    %131 = vmatpush1.msra.mxu0 0.0
    %132 = vmatprep.subr.mxu0 0.0
    %133 = vmatpush1.msra.mxu0 0.0
    %134 = vmatprep.mubr.f32.mxu0 0.0
    %135 = vmatmul.mubr.f32.gmra.mrb[0].mxu0 %v68
    %v136 = vpop.f32.mrb[0].mxu0
    %v137 = vadd.f32 0.0, %v136
    %v138 = vpop.f32.mrb[0].mxu0
    %139 = vdwg.mxu0
    %v141 = vsel %vm66, %v137, 0
    %143 = vmatprep.subr.mxu0 0.0
    %144 = vmatpush1.msra.mxu0 %v62
    %145 = vmatprep.subr.mxu0 0.0
    %146 = vmatpush1.msra.mxu0 %v63
    %147 = vmatprep.subr.mxu0 0.0
    %148 = vmatpush1.msra.mxu0 %v64
    %149 = vmatprep.subr.mxu0 0.0
    %150 = vmatpush1.msra.mxu0 %v65
    %151 = vmatprep.subr.mxu0 0.0
    %152 = vmatpush1.msra.mxu0 0.0
    %153 = vmatprep.subr.mxu0 0.0
    %154 = vmatpush1.msra.mxu0 0.0
    %155 = vmatprep.subr.mxu0 0.0
    %156 = vmatpush1.msra.mxu0 0.0
    %157 = vmatprep.subr.mxu0 0.0
    %158 = vmatpush1.msra.mxu0 0.0
    %159 = vmatprep.subr.mxu0 0.0
    %160 = vmatpush1.msra.mxu0 0.0
    %161 = vmatprep.subr.mxu0 0.0
    %162 = vmatpush1.msra.mxu0 0.0
    %163 = vmatprep.subr.mxu0 0.0
    %164 = vmatpush1.msra.mxu0 0.0
    %165 = vmatprep.subr.mxu0 0.0
    %166 = vmatpush1.msra.mxu0 0.0
    %167 = vmatprep.subr.mxu0 0.0
    %168 = vmatpush1.msra.mxu0 0.0
    %169 = vmatprep.subr.mxu0 0.0
    %170 = vmatpush1.msra.mxu0 0.0
    %171 = vmatprep.subr.mxu0 0.0
    %172 = vmatpush1.msra.mxu0 0.0
    %173 = vmatprep.subr.mxu0 0.0
    %174 = vmatpush1.msra.mxu0 0.0
    %175 = vmatprep.subr.mxu0 0.0
    %176 = vmatpush1.msra.mxu0 0.0
    %177 = vmatprep.subr.mxu0 0.0
    %178 = vmatpush1.msra.mxu0 0.0
    %179 = vmatprep.subr.mxu0 0.0
    %180 = vmatpush1.msra.mxu0 0.0
    %181 = vmatprep.subr.mxu0 0.0
    %182 = vmatpush1.msra.mxu0 0.0
    %183 = vmatprep.subr.mxu0 0.0
    %184 = vmatpush1.msra.mxu0 0.0
    %185 = vmatprep.subr.mxu0 0.0
    %186 = vmatpush1.msra.mxu0 0.0
    %187 = vmatprep.subr.mxu0 0.0
    %188 = vmatpush1.msra.mxu0 0.0
    %189 = vmatprep.subr.mxu0 0.0
    %190 = vmatpush1.msra.mxu0 0.0
    %191 = vmatprep.subr.mxu0 0.0
    %192 = vmatpush1.msra.mxu0 0.0
    %193 = vmatprep.subr.mxu0 0.0
    %194 = vmatpush1.msra.mxu0 0.0
    %195 = vmatprep.subr.mxu0 0.0
    %196 = vmatpush1.msra.mxu0 0.0
    %197 = vmatprep.subr.mxu0 0.0
    %198 = vmatpush1.msra.mxu0 0.0
    %199 = vmatprep.subr.mxu0 0.0
    %200 = vmatpush1.msra.mxu0 0.0
    %201 = vmatprep.subr.mxu0 0.0
    %202 = vmatpush1.msra.mxu0 0.0
    %203 = vmatprep.subr.mxu0 0.0
    %204 = vmatpush1.msra.mxu0 0.0
    %205 = vmatprep.subr.mxu0 0.0
    %206 = vmatpush1.msra.mxu0 0.0
    %207 = vmatprep.mubr.f32.mxu0 0.0
    %208 = vmatmul.mubr.f32.gmra.mrb[0].mxu0 %v141
    %v209 = vpop.f32.mrb[0].mxu0
    %v210 = vadd.f32 0.0, %v209
    %v211 = vpop.f32.mrb[0].mxu0
    %212 = vdwg.mxu0
    %213 = vst [vmem:[#allocation9] sm:$0xff] %v210
    %214 = vmax.xlane.f32.xlu0 %v210
    %v215 = vpop.xlane.xlu0 %214
    %v216 = vsub.f32 %v210, %v215
    %v217 = vmul.f32 %v216, 1.442695
    %v218 = vpow.pop %v217
    %219 = vadd.xlane.f32.xlu0 %v218
    %v220 = vpop.xlane.xlu0 %219
    %v221 = vrcp.pop %v220
    %v222 = vmul.f32 %v218, %v221
    %223 = vst [vmem:[#allocation8] sm:$0xff] %v222
    // Predicated region
    $region26: #{policy_forward.1} parent=1 // pred_check
      _
    $region27: #{policy_forward.1} parent=1 // pred_check_branch
      %225 = sbr.rel (0) target = $region29
    $region28: #{policy_forward.1} parent=1 // pred_region
      %s227 = ssub.s32 128, 128
      %228 = vsyncadd [#allocation4], %s227
      %s230 = sshll.u32 [#allocation8], 4
      %s231 = int_to_ptr.vmem [resolvable:$true] %s230
      %233 = dma.vmem_to_hbm [thread:$0]  %s231, 128, %s3, [#allocation4]
    $region29: #{policy_forward.1} parent=1 // pred_fallthru
      _
    // Predicated region
    $region30: #{policy_forward.1} parent=1 // pred_check
      _
    $region31: #{policy_forward.1} parent=1 // pred_check_branch
      %235 = sbr.rel (0) target = $region33
    $region32: #{policy_forward.1} parent=1 // pred_region
      %s237 = ssub.s32 128, 128
      %238 = vsyncadd [#allocation10], %s237
      %s240 = sshll.u32 [#allocation9], 4
      %s241 = int_to_ptr.vmem [resolvable:$true] %s240
      %243 = dma.vmem_to_hbm [thread:$0]  %s241, 128, %s4, [#allocation10]
    $region33: #{policy_forward.1} parent=1 // pred_fallthru
      _
    // Predicated region
    $region34: #{policy_forward.1} parent=1 // pred_check
      _
    $region35: #{policy_forward.1} parent=1 // pred_check_branch
      %245 = sbr.rel (0) target = $region37
    $region36: #{policy_forward.1} parent=1 // pred_region
      %246 = dma.done [#allocation4], 128
    $region37: #{policy_forward.1} parent=1 // pred_fallthru
      _
    // Predicated region
    $region38: #{policy_forward.1} parent=1 // pred_check
      _
    $region39: #{policy_forward.1} parent=1 // pred_check_branch
      %248 = sbr.rel (0) target = $region41
    $region40: #{policy_forward.1} parent=1 // pred_region
      %249 = dma.done [#allocation10], 128
    $region41: #{policy_forward.1} parent=1 // pred_fallthru
      _
    %250 = vsyncpa [#allocation3], 1
    %251 = vsyncpa [#allocation6], 1
    %252 = vsyncpa [#allocation4], 1
    %253 = vsyncpa [#allocation10], 1

</llo_original>
